<compile_context>
chip_gen: v7x
topology: tpu7x:2x2x1
jax: 0.10.0
libtpu: 0.0.40
codegen_flags: <defaults>
</compile_context>

<pallas_src>
import functools

import jax
import jax.numpy as jnp
from jax.experimental import pallas as pl
from jax.experimental.pallas import tpu as pltpu


def _round_up(x: int, m: int) -> int:
    return ((x + m - 1) // m) * m


# --------------------------------------------------------------------------- #
# Kernels
# --------------------------------------------------------------------------- #
def _layernorm_f32(x_ref, g_ref, b_ref, *, eps: float, d_valid: int):
    """LayerNorm over the true feature dim (biased variance, PyTorch eps)."""
    x = x_ref[...].astype(jnp.float32)
    dim_p = x.shape[-1]
    inv_d = 1.0 / float(d_valid)
    if d_valid != dim_p:
        mask = jax.lax.broadcasted_iota(jnp.int32, (1, dim_p), 1) < d_valid
        x = jnp.where(mask, x, 0.0)
    mu = jnp.sum(x, axis=-1, keepdims=True) * inv_d
    xc = x - mu
    if d_valid != dim_p:
        xc = jnp.where(mask, xc, 0.0)
    var = jnp.sum(xc * xc, axis=-1, keepdims=True) * inv_d
    xn = xc * jax.lax.rsqrt(var + eps)
    # gamma/beta are zero-padded, so padded feature columns stay exactly zero.
    return xn * g_ref[...] + b_ref[...]


def _gelu(h, exact: bool):
    if exact:  # nn.GELU() default (erf form)
        return 0.5 * h * (1.0 + jax.lax.erf(h * 0.7071067811865476))
    return jax.nn.gelu(h, approximate=True)  # tanh form -> EUP slot (v5e win)


def _ffn_kernel_fused(x_ref, g_ref, b_ref, w1_ref, b1_ref, w2_ref, b2_ref,
                      o_ref, *, eps: float, d_valid: int, exact_gelu: bool):
    """Whole hidden dim in one shot (weights resident)."""
    xn = _layernorm_f32(x_ref, g_ref, b_ref, eps=eps, d_valid=d_valid)
    h = jnp.dot(xn.astype(w1_ref.dtype), w1_ref[...],
                preferred_element_type=jnp.float32) + b1_ref[...]
    h = _gelu(h, exact_gelu)
    # Dropout(p=0.0) is the identity — nothing to do.
    y = jnp.dot(h.astype(w2_ref.dtype), w2_ref[...],
                preferred_element_type=jnp.float32) + b2_ref[...]
    o_ref[...] = y.astype(o_ref.dtype)


def _ffn_kernel_ktiled(x_ref, g_ref, b_ref, w1_ref, b1_ref, w2_ref, b2_ref,
                       o_ref, xn_ref, acc_ref, *, eps: float, d_valid: int,
                       exact_gelu: bool):
    """Hidden axis tiled: accumulate partial (hidden-chunk) contributions."""
    k = pl.program_id(1)

    @pl.when(k == 0)
    def _():
        xn = _layernorm_f32(x_ref, g_ref, b_ref, eps=eps, d_valid=d_valid)
        xn_ref[...] = xn.astype(xn_ref.dtype)      # cache LN output in MXU dtype
        acc_ref[...] = jnp.zeros_like(acc_ref)

    h = jnp.dot(xn_ref[...], w1_ref[...],
                preferred_element_type=jnp.float32) + b1_ref[...]
    h = _gelu(h, exact_gelu)
    acc_ref[...] += jnp.dot(h.astype(w2_ref.dtype), w2_ref[...],
                            preferred_element_type=jnp.float32)

    @pl.when(k == pl.num_programs(1) - 1)
    def _():
        o_ref[...] = (acc_ref[...] + b2_ref[...]).astype(o_ref.dtype)


# --------------------------------------------------------------------------- #
# One-time capability / budget probes
# --------------------------------------------------------------------------- #
@functools.lru_cache(maxsize=1)
def _single_buffer_supported() -> bool:
    """Probe once (cached) whether pipeline_mode=pl.Buffered(1) lowers here."""
    try:
        def _k(x_ref, o_ref):
            o_ref[...] = x_ref[...] + 1.0
        f = pl.pallas_call(
            _k,
            out_shape=jax.ShapeDtypeStruct((8, 128), jnp.float32),
            grid=(1,),
            in_specs=[pl.BlockSpec((8, 128), lambda i: (0, 0),
                                   pipeline_mode=pl.Buffered(1))],
            out_specs=pl.BlockSpec((8, 128), lambda i: (0, 0)),
        )
        jax.block_until_ready(f(jnp.zeros((8, 128), jnp.float32)))
        return True
    except Exception:
        return False


@functools.lru_cache(maxsize=1)
def _vmem_ceiling() -> int:
    """Per-generation VMEM ceiling (physical capacity minus compiler headroom)."""
    try:
        cap = int(pltpu.get_tpu_info().vmem_capacity_bytes)
    except Exception:
        cap = 64 << 20          # conservative fallback (v7x per-TC size)
    # ~102 MiB on v5e/v6e (128 MiB physical), ~52 MiB on v7x (64 MiB per TC).
    return max(32 << 20, int(cap * 0.8))


# --------------------------------------------------------------------------- #
# pallas_call builder
# --------------------------------------------------------------------------- #
def _ffn_call(x2d, gamma2, beta2, w1p, b1_2, w2p, b2_2, *, eps, d_valid, tm, th,
              out_dtype, mxu_dtype, single_buffer_weights, vmem_limit,
              exact_gelu):
    M, dim_p = x2d.shape
    hid_p = w1p.shape[1]
    n_m = pl.cdiv(M, tm)          # ragged row grid: no wrapper-side row padding
    n_k = hid_p // th

    def inv(shape, nargs):
        # Grid-invariant parameter: constant index_map (no re-DMA); keep it
        # single-buffered when this build supports pipeline_mode=Buffered(1).
        idx = (lambda i: (0, 0)) if nargs == 1 else (lambda i, k: (0, 0))
        if single_buffer_weights:
            return pl.BlockSpec(shape, idx, pipeline_mode=pl.Buffered(1))
        return pl.BlockSpec(shape, idx)

    if n_k == 1:
        grid = (n_m,)
        in_specs = [
            pl.BlockSpec((tm, dim_p), lambda i: (i, 0)),       # x rows
            inv((1, dim_p), 1),                                # gamma
            inv((1, dim_p), 1),                                # beta
            inv((dim_p, hid_p), 1),                            # W1 (resident)
            inv((1, hid_p), 1),                                # b1
            inv((hid_p, dim_p), 1),                            # W2 (resident)
            inv((1, dim_p), 1),                                # b2
        ]
        out_specs = pl.BlockSpec((tm, dim_p), lambda i: (i, 0))
        scratch = []
        kernel = functools.partial(_ffn_kernel_fused, eps=eps, d_valid=d_valid,
                                   exact_gelu=exact_gelu)
        semantics = ("parallel",)
    else:
        grid = (n_m, n_k)                                      # reduction last
        in_specs = [
            pl.BlockSpec((tm, dim_p), lambda i, k: (i, 0)),    # x rows
            inv((1, dim_p), 2),                                # gamma
            inv((1, dim_p), 2),                                # beta
            pl.BlockSpec((dim_p, th), lambda i, k: (0, k)),    # W1 chunk
            pl.BlockSpec((1, th), lambda i, k: (0, k)),        # b1 chunk
            pl.BlockSpec((th, dim_p), lambda i, k: (k, 0)),    # W2 chunk
            inv((1, dim_p), 2),                                # b2
        ]
        out_specs = pl.BlockSpec((tm, dim_p), lambda i, k: (i, 0))
        scratch = [pltpu.VMEM((tm, dim_p), mxu_dtype),         # cached LN out
                   pltpu.VMEM((tm, dim_p), jnp.float32)]       # f32 accumulator
        kernel = functools.partial(_ffn_kernel_ktiled, eps=eps, d_valid=d_valid,
                                   exact_gelu=exact_gelu)
        semantics = ("parallel", "arbitrary")

    return pl.pallas_call(
        kernel,
        out_shape=jax.ShapeDtypeStruct((M, dim_p), out_dtype),
        grid_spec=pltpu.PrefetchScalarGridSpec(
            num_scalar_prefetch=0,
            grid=grid,
            in_specs=in_specs,
            out_specs=out_specs,
            scratch_shapes=scratch),
        compiler_params=pltpu.CompilerParams(
            dimension_semantics=semantics,
            vmem_limit_bytes=int(vmem_limit)),
    )(x2d, gamma2, beta2, w1p, b1_2, w2p, b2_2)


# --------------------------------------------------------------------------- #
# Public wrapper
# --------------------------------------------------------------------------- #
def feed_forward(x, gamma, beta, w1, b1, w2, b2, *, eps=1e-5, row_tile=1024,
                 mxu_dtype=jnp.bfloat16, out_dtype=None, exact_gelu=True,
                 hidden_tile=None):
    """x: (batch, seq, dim). Linear weights pre-transposed to (in, out)."""
    batch, seq, dim = x.shape
    hidden = w1.shape[1]
    M = batch * seq
    if out_dtype is None:
        out_dtype = x.dtype

    dim_p = _round_up(dim, 128)
    hid_p = _round_up(hidden, 128)

    # Stream x in its native dtype; only pad the feature dim when it is not
    # already lane-dense (128-aligned).  Rows are never padded (ragged grid).
    x2d = x.reshape(M, dim)
    if dim_p != dim:
        x2d = jnp.pad(x2d, ((0, 0), (0, dim_p - dim)))

    # Zero-padded params (weight-sized -> cheap).  Padded rows/cols contribute 0.
    gamma2 = jnp.pad(gamma.astype(jnp.float32), (0, dim_p - dim)).reshape(1, dim_p)
    beta2 = jnp.pad(beta.astype(jnp.float32), (0, dim_p - dim)).reshape(1, dim_p)
    b1_2 = jnp.pad(b1.astype(jnp.float32), (0, hid_p - hidden)).reshape(1, hid_p)
    b2_2 = jnp.pad(b2.astype(jnp.float32), (0, dim_p - dim)).reshape(1, dim_p)
    w1p = jnp.pad(w1, ((0, dim_p - dim), (0, hid_p - hidden))).astype(mxu_dtype)
    w2p = jnp.pad(w2, ((0, hid_p - hidden), (0, dim_p - dim))).astype(mxu_dtype)

    x_bytes = jnp.dtype(x2d.dtype).itemsize
    o_bytes = jnp.dtype(out_dtype).itemsize
    w_bytes = jnp.dtype(mxu_dtype).itemsize
    # Sublane alignment of the row tile (16 for packed 16-bit I/O, 8 for f32).
    row_align = 16 if min(x_bytes, o_bytes) < 4 else 8

    ceiling = _vmem_ceiling()
    single_buf = _single_buffer_supported()

    def est(tm, th):
        """Per-step VMEM footprint estimate (bytes)."""
        n_k = hid_p // th
        w_bufs = 1 if (n_k == 1 and single_buf) else 2
        e = 2 * tm * dim_p * x_bytes                 # x tile (double-buffered)
        e += 2 * tm * dim_p * o_bytes                # out tile (double-buffered)
        e += w_bufs * 2 * dim_p * th * w_bytes       # W1 + W2 chunks
        e += w_bufs * (3 * dim_p + th) * 4           # gamma/beta/b2 + b1 chunk
        e += tm * th * (4 + w_bytes)                 # h f32 + its MXU-dtype copy
        e += tm * dim_p * 4                          # LN f32 live values
        e += tm * dim_p * w_bytes                    # xn in MXU dtype
        if n_k > 1:
            e += tm * dim_p * 4                      # f32 accumulator scratch
        e += 2 << 20                                 # compiler-internal scratch
        return e

    # Row tile: as large as the budget allows, but keep >= ~4 row-grid steps
    # when M is big enough (so each v7x TensorCore gets >= 2 pipelined steps).
    tm_cap = min(int(row_tile), _round_up(max(M, 1), row_align))
    tm_overlap = _round_up(max(pl.cdiv(M, 4), 1), row_align)
    tm = max(row_align, min(tm_cap, tm_overlap))

    def pick_th(tm_):
        th_ = hid_p
        while est(tm_, th_) > ceiling and th_ % 256 == 0:
            th_ //= 2            # halving keeps divisibility into hid_p
        return th_

    # Prefer shrinking the hidden chunk (K-tiling) before shrinking tm.
    th = pick_th(tm)
    while est(tm, th) > ceiling and tm > row_align:
        tm = max(row_align, (tm // 2 // row_align) * row_align)
        th = pick_th(tm)

    if hidden_tile is not None:                      # explicit tuning override
        ht = int(hidden_tile)
        if ht % 128 == 0 and hid_p % ht == 0:
            th = ht

    out2d = _ffn_call(x2d, gamma2, beta2, w1p, b1_2, w2p, b2_2,
                      eps=eps, d_valid=dim, tm=tm, th=th,
                      out_dtype=out_dtype, mxu_dtype=mxu_dtype,
                      single_buffer_weights=single_buf,
                      vmem_limit=ceiling, exact_gelu=exact_gelu)
    if dim_p != dim:
        out2d = out2d[:, :dim]
    return out2d.reshape(batch, seq, dim)


# --------------------------------------------------------------------------- #
# Reference + test harness
# --------------------------------------------------------------------------- #
def _reference(x, gamma, beta, w1, b1, w2, b2, eps=1e-5):
    x = x.astype(jnp.float32)
    mu = jnp.mean(x, axis=-1, keepdims=True)
    var = jnp.mean((x - mu) ** 2, axis=-1, keepdims=True)
    xn = (x - mu) / jnp.sqrt(var + eps) * gamma + beta
    h = xn @ w1 + b1
    h = jax.nn.gelu(h, approximate=False)
    return h @ w2 + b2


def _make_params(key, dim, hidden):
    kw1, kb1, kw2, kb2 = jax.random.split(key, 4)
    gamma = jnp.ones((dim,), jnp.float32)                       # LayerNorm weight
    beta = jnp.zeros((dim,), jnp.float32)                       # LayerNorm bias
    # nn.Linear stores (out, in); keep math identical with (in, out) + right-mul.
    w1 = jax.random.normal(kw1, (dim, hidden), jnp.float32) * 0.05
    b1 = jax.random.normal(kb1, (hidden,), jnp.float32) * 0.05
    w2 = jax.random.normal(kw2, (hidden, dim), jnp.float32) * 0.05
    b2 = jax.random.normal(kb2, (dim,), jnp.float32) * 0.05
    return gamma, beta, w1, b1, w2, b2


if __name__ == "__main__":
    key = jax.random.PRNGKey(0)
    k1, k2, k3, k4, k5, k6 = jax.random.split(key, 6)

    # Case 1: lane-dense ViT-like shapes -> fused path, 4 pipelined row steps.
    batch, seq, dim, hidden = 2, 64, 128, 256
    x = jax.random.normal(k1, (batch, seq, dim), dtype=jnp.float32)
    params = _make_params(k2, dim, hidden)
    out = jax.block_until_ready(feed_forward(x, *params))
    ref = _reference(x, *params)
    assert out.shape == (batch, seq, dim)
    assert jnp.allclose(out, ref, atol=2e-2, rtol=2e-2), \
        float(jnp.max(jnp.abs(out - ref)))

    # Case 2: ragged rows + non-128 feature dim -> masked LN + ragged row grid.
    batch, seq, dim, hidden = 2, 10, 96, 160
    x = jax.random.normal(k3, (batch, seq, dim), dtype=jnp.float32)
    params = _make_params(k4, dim, hidden)
    out = jax.block_until_ready(feed_forward(x, *params))
    ref = _reference(x, *params)
    assert out.shape == (batch, seq, dim)
    assert jnp.allclose(out, ref, atol=2e-2, rtol=2e-2), \
        float(jnp.max(jnp.abs(out - ref)))

    # Case 3: force the hidden-axis (K-tiled) accumulator path.
    batch, seq, dim, hidden = 2, 32, 128, 512
    x = jax.random.normal(k5, (batch, seq, dim), dtype=jnp.float32)
    params = _make_params(k6, dim, hidden)
    out = jax.block_until_ready(feed_forward(x, *params, hidden_tile=256))
    ref = _reference(x, *params)
    assert out.shape == (batch, seq, dim)
    assert jnp.allclose(out, ref, atol=2e-2, rtol=2e-2), \
        float(jnp.max(jnp.abs(out - ref)))

    print("KERNEL_OK")
</pallas_src>

<mosaic_0001>
module attributes {stable_mosaic.version = 11 : i64} {
  func.func @_k(%arg0: i32, %arg1: memref<8x128xf32, #tpu.memory_space<vmem>>, %arg2: memref<8x128xf32, #tpu.memory_space<vmem>>) attributes {dimension_semantics = [#tpu.dimension_semantics<arbitrary>], iteration_bounds = array<i64: 1>, scalar_prefetch = 0 : i64, scratch_operands = 0 : i64, tpu.core_type = #tpu.core_type<tc>, window_params = [{pipeline_mode = #tpu.pipeline_mode<synchronous>, transform_indices = @transform_0, window_bounds = array<i64: 8, 128>}, {pipeline_mode = #tpu.pipeline_mode<synchronous>, transform_indices = @transform_1, window_bounds = array<i64: 8, 128>}]} {
    %c0 = arith.constant 0 : index
    %c0_0 = arith.constant 0 : index
    %0 = vector.load %arg1[%c0, %c0_0] : memref<8x128xf32, #tpu.memory_space<vmem>>, vector<8x128xf32>
    %cst = arith.constant 1.000000e+00 : f32
    %1 = vector.broadcast %cst : f32 to vector<8x128xf32>
    %2 = arith.addf %0, %1 : vector<8x128xf32>
    %c0_1 = arith.constant 0 : index
    %c0_2 = arith.constant 0 : index
    %3 = vector.load %arg2[%c0_1, %c0_2] : memref<8x128xf32, #tpu.memory_space<vmem>>, vector<8x128xf32>
    tpu.vector_store %arg2[%c0_1, %c0_2], %2 {strides = array<i32>} : memref<8x128xf32, #tpu.memory_space<vmem>>, vector<8x128xf32>,
    return
  }
  func.func @transform_0(%arg0: i32) -> (i32, i32) {
    %c0_i32 = arith.constant 0 : i32
    %c0_i32_0 = arith.constant 0 : i32
    %c0_i32_1 = arith.constant 0 : i32
    return %c0_i32, %c0_i32_0 : i32, i32
  }
  func.func @transform_1(%arg0: i32) -> (i32, i32) {
    %c0_i32 = arith.constant 0 : i32
    %c0_i32_0 = arith.constant 0 : i32
    %c0_i32_1 = arith.constant 0 : i32
    return %c0_i32, %c0_i32_0 : i32, i32
  }
}

module attributes {stable_mosaic.version = 11 : i64} {
  func.func @_ffn_kernel_fused(%arg0: i32, %arg1: memref<32x128xf32, #tpu.memory_space<vmem>>, %arg2: memref<1x128xf32, #tpu.memory_space<vmem>>, %arg3: memref<1x128xf32, #tpu.memory_space<vmem>>, %arg4: memref<128x256xbf16, #tpu.memory_space<vmem>>, %arg5: memref<1x256xf32, #tpu.memory_space<vmem>>, %arg6: memref<256x128xbf16, #tpu.memory_space<vmem>>, %arg7: memref<1x128xf32, #tpu.memory_space<vmem>>, %arg8: memref<32x128xf32, #tpu.memory_space<vmem>>) attributes {dimension_semantics = [#tpu.dimension_semantics<parallel>], iteration_bounds = array<i64: 4>, scalar_prefetch = 0 : i64, scratch_operands = 0 : i64, tpu.core_type = #tpu.core_type<tc>, window_params = [{transform_indices = @transform_0, window_bounds = array<i64: 32, 128>}, {pipeline_mode = #tpu.pipeline_mode<synchronous>, transform_indices = @transform_1, window_bounds = array<i64: 1, 128>}, {pipeline_mode = #tpu.pipeline_mode<synchronous>, transform_indices = @transform_2, window_bounds = array<i64: 1, 128>}, {pipeline_mode = #tpu.pipeline_mode<synchronous>, transform_indices = @transform_3, window_bounds = array<i64: 128, 256>}, {pipeline_mode = #tpu.pipeline_mode<synchronous>, transform_indices = @transform_4, window_bounds = array<i64: 1, 256>}, {pipeline_mode = #tpu.pipeline_mode<synchronous>, transform_indices = @transform_5, window_bounds = array<i64: 256, 128>}, {pipeline_mode = #tpu.pipeline_mode<synchronous>, transform_indices = @transform_6, window_bounds = array<i64: 1, 128>}, {transform_indices = @transform_7, window_bounds = array<i64: 32, 128>}]} {
    %c0 = arith.constant 0 : index
    %c0_0 = arith.constant 0 : index
    %0 = vector.load %arg1[%c0, %c0_0] : memref<32x128xf32, #tpu.memory_space<vmem>>, vector<32x128xf32>
    %cst = arith.constant dense<0.000000e+00> : vector<32xf32>
    %1 = vector.multi_reduction <add>, %0, %cst [1] : vector<32x128xf32> to vector<32xf32>
    %2 = vector.shape_cast %1 : vector<32xf32> to vector<32x1xf32>
    %cst_1 = arith.constant 7.812500e-03 : f32
    %3 = vector.broadcast %cst_1 : f32 to vector<32x1xf32>
    %4 = arith.mulf %2, %3 : vector<32x1xf32>
    %5 = vector.broadcast %4 : vector<32x1xf32> to vector<32x128xf32>
    %6 = arith.subf %0, %5 : vector<32x128xf32>
    %7 = arith.mulf %6, %6 : vector<32x128xf32>
    %cst_2 = arith.constant dense<0.000000e+00> : vector<32xf32>
    %8 = vector.multi_reduction <add>, %7, %cst_2 [1] : vector<32x128xf32> to vector<32xf32>
    %9 = vector.shape_cast %8 : vector<32xf32> to vector<32x1xf32>
    %cst_3 = arith.constant 7.812500e-03 : f32
    %10 = vector.broadcast %cst_3 : f32 to vector<32x1xf32>
    %11 = arith.mulf %9, %10 : vector<32x1xf32>
    %cst_4 = arith.constant 9.99999974E-6 : f32
    %12 = vector.broadcast %cst_4 : f32 to vector<32x1xf32>
    %13 = arith.addf %11, %12 : vector<32x1xf32>
    %14 = math.rsqrt %13 : vector<32x1xf32>
    %15 = vector.broadcast %14 : vector<32x1xf32> to vector<32x128xf32>
    %16 = arith.mulf %6, %15 : vector<32x128xf32>
    %c0_5 = arith.constant 0 : index
    %c0_6 = arith.constant 0 : index
    %17 = vector.load %arg2[%c0_5, %c0_6] : memref<1x128xf32, #tpu.memory_space<vmem>>, vector<1x128xf32>
    %18 = vector.broadcast %17 : vector<1x128xf32> to vector<32x128xf32>
    %19 = arith.mulf %16, %18 : vector<32x128xf32>
    %c0_7 = arith.constant 0 : index
    %c0_8 = arith.constant 0 : index
    %20 = vector.load %arg3[%c0_7, %c0_8] : memref<1x128xf32, #tpu.memory_space<vmem>>, vector<1x128xf32>
    %21 = vector.broadcast %20 : vector<1x128xf32> to vector<32x128xf32>
    %22 = arith.addf %19, %21 : vector<32x128xf32>
    %23 = arith.truncf %22 : vector<32x128xf32> to vector<32x128xbf16>
    %c0_9 = arith.constant 0 : index
    %c0_10 = arith.constant 0 : index
    %24 = vector.load %arg4[%c0_9, %c0_10] : memref<128x256xbf16, #tpu.memory_space<vmem>>, vector<128x256xbf16>
    %cst_11 = arith.constant dense<0.000000e+00> : vector<32x256xf32>
    %25 = tpu.matmul %23, %24, %cst_11 {dimension_numbers = #tpu.dot_dimension_numbers<[1], [0], [0], [1], [0, 0, 1, 1], [], []>} : vector<32x128xbf16>, vector<128x256xbf16>, vector<32x256xf32> -> vector<32x256xf32>
    %c0_12 = arith.constant 0 : index
    %c0_13 = arith.constant 0 : index
    %26 = vector.load %arg5[%c0_12, %c0_13] : memref<1x256xf32, #tpu.memory_space<vmem>>, vector<1x256xf32>
    %27 = vector.broadcast %26 : vector<1x256xf32> to vector<32x256xf32>
    %28 = arith.addf %25, %27 : vector<32x256xf32>
    %cst_14 = arith.constant 5.000000e-01 : f32
    %29 = vector.broadcast %cst_14 : f32 to vector<32x256xf32>
    %30 = arith.mulf %29, %28 : vector<32x256xf32>
    %cst_15 = arith.constant 0.707106769 : f32
    %31 = vector.broadcast %cst_15 : f32 to vector<32x256xf32>
    %32 = arith.mulf %28, %31 : vector<32x256xf32>
    %33 = math.erf %32 : vector<32x256xf32>
    %cst_16 = arith.constant 1.000000e+00 : f32
    %34 = vector.broadcast %cst_16 : f32 to vector<32x256xf32>
    %35 = arith.addf %34, %33 : vector<32x256xf32>
    %36 = arith.mulf %30, %35 : vector<32x256xf32>
    %37 = arith.truncf %36 : vector<32x256xf32> to vector<32x256xbf16>
    %c0_17 = arith.constant 0 : index
    %c0_18 = arith.constant 0 : index
    %38 = vector.load %arg6[%c0_17, %c0_18] : memref<256x128xbf16, #tpu.memory_space<vmem>>, vector<256x128xbf16>
    %cst_19 = arith.constant dense<0.000000e+00> : vector<32x128xf32>
    %39 = tpu.matmul %37, %38, %cst_19 {dimension_numbers = #tpu.dot_dimension_numbers<[1], [0], [0], [1], [0, 0, 1, 1], [], []>} : vector<32x256xbf16>, vector<256x128xbf16>, vector<32x128xf32> -> vector<32x128xf32>
    %c0_20 = arith.constant 0 : index
    %c0_21 = arith.constant 0 : index
    %40 = vector.load %arg7[%c0_20, %c0_21] : memref<1x128xf32, #tpu.memory_space<vmem>>, vector<1x128xf32>
    %41 = vector.broadcast %40 : vector<1x128xf32> to vector<32x128xf32>
    %42 = arith.addf %39, %41 : vector<32x128xf32>
    %c0_22 = arith.constant 0 : index
    %c0_23 = arith.constant 0 : index
    %43 = vector.load %arg8[%c0_22, %c0_23] : memref<32x128xf32, #tpu.memory_space<vmem>>, vector<32x128xf32>
    tpu.vector_store %arg8[%c0_22, %c0_23], %42 {strides = array<i32>} : memref<32x128xf32, #tpu.memory_space<vmem>>, vector<32x128xf32>,
    return
  }
  func.func @transform_0(%arg0: i32) -> (i32, i32) {
    %c0_i32 = arith.constant 0 : i32
    %c0_i32_0 = arith.constant 0 : i32
    return %arg0, %c0_i32 : i32, i32
  }
  func.func @transform_1(%arg0: i32) -> (i32, i32) {
    %c0_i32 = arith.constant 0 : i32
    %c0_i32_0 = arith.constant 0 : i32
    %c0_i32_1 = arith.constant 0 : i32
    return %c0_i32, %c0_i32_0 : i32, i32
  }
  func.func @transform_2(%arg0: i32) -> (i32, i32) {
    %c0_i32 = arith.constant 0 : i32
    %c0_i32_0 = arith.constant 0 : i32
    %c0_i32_1 = arith.constant 0 : i32
    return %c0_i32, %c0_i32_0 : i32, i32
  }
  func.func @transform_3(%arg0: i32) -> (i32, i32) {
    %c0_i32 = arith.constant 0 : i32
    %c0_i32_0 = arith.constant 0 : i32
    %c0_i32_1 = arith.constant 0 : i32
    return %c0_i32, %c0_i32_0 : i32, i32
  }
  func.func @transform_4(%arg0: i32) -> (i32, i32) {
    %c0_i32 = arith.constant 0 : i32
    %c0_i32_0 = arith.constant 0 : i32
    %c0_i32_1 = arith.constant 0 : i32
    return %c0_i32, %c0_i32_0 : i32, i32
  }
  func.func @transform_5(%arg0: i32) -> (i32, i32) {
    %c0_i32 = arith.constant 0 : i32
    %c0_i32_0 = arith.constant 0 : i32
    %c0_i32_1 = arith.constant 0 : i32
    return %c0_i32, %c0_i32_0 : i32, i32
  }
  func.func @transform_6(%arg0: i32) -> (i32, i32) {
    %c0_i32 = arith.constant 0 : i32
    %c0_i32_0 = arith.constant 0 : i32
    %c0_i32_1 = arith.constant 0 : i32
    return %c0_i32, %c0_i32_0 : i32, i32
  }
  func.func @transform_7(%arg0: i32) -> (i32, i32) {
    %c0_i32 = arith.constant 0 : i32
    %c0_i32_0 = arith.constant 0 : i32
    return %arg0, %c0_i32 : i32, i32
  }
}

</mosaic_0001>

<llo_original>
// kernel: tpu_custom_call.1
$region0: #{tpu_custom_call.1}
  #allocation0 [shape = 'u32[]', space=smem, size = 0x4, offset = 0x4, fixed_abs, tag = 'smem constant byte address 0x4 - core index']
  #allocation1 [shape = 'u32[144,128]{1,0:T(1,128)}', space=vmem, size = 0x12000, scoped, tag = 'internal scratch']
  %s0 = inlined_call_operand.hbm [shape: f32[8,128], index: 0, kind: input, shape index: {}]
  %s1 = inlined_call_operand.hbm [shape: f32[8,128], index: 1, kind: output, shape index: {}]
  %s2 = sld [smem:[#allocation0]]
  $region18: #{tpu_custom_call.1} parent=0
    _
  %s4 = ssub.s32 1, %s2
  %s5 = scalar_select 0, %s4, %s2
  $region1: #{tpu_custom_call.1} parent=0
    #allocation2 [shape = 'u8[4096]{0}', space=vmem, size = 0x1000, scoped, tag = 'input window, operand 0, single buffered']
    #allocation3 [shape = 's32[1]{0}', space=sflag, size = 0x4, scoped, tag = 'scoped memory for tpu_custom_call.1']
    #allocation4 [shape = 's32[1]{0}', space=sflag, size = 0x4, scoped, tag = 'scoped memory for tpu_custom_call.1']
    #allocation5 [shape = 'u8[4096]{0}', space=vmem, size = 0x1000, scoped, tag = 'output window, operand 0, single buffered']
    %6 = vsyncpa [#allocation3], 0
    %7 = vsyncpa [#allocation4], 0
    // Predicated region
    $region2: #{tpu_custom_call.1} parent=1 // pred_check
      _
    $region3: #{tpu_custom_call.1} parent=1 // pred_check_branch
      %9 = sbr.rel (0) target = $region5
    $region4: #{tpu_custom_call.1} parent=1 // pred_region
      %s11 = ssub.s32 128, 128
      %12 = vsyncadd [#allocation3], %s11
      %s14 = sshll.u32 [#allocation2], 4
      %s15 = int_to_ptr.vmem [resolvable:$true] %s14
      %17 = dma.hbm_to_vmem [thread:$0]  %s0, 128, %s15, [#allocation3]
    $region5: #{tpu_custom_call.1} parent=1 // pred_fallthru
      _
    // Predicated region
    $region6: #{tpu_custom_call.1} parent=1 // pred_check
      _
    $region7: #{tpu_custom_call.1} parent=1 // pred_check_branch
      %19 = sbr.rel (0) target = $region9
    $region8: #{tpu_custom_call.1} parent=1 // pred_region
      %20 = dma.done [#allocation3], 128
    $region9: #{tpu_custom_call.1} parent=1 // pred_fallthru
      _
    %v21 = vld [vmem:[#allocation2] sm:$0xff]
    %v22 = vadd.f32 %v21, 1.0
    %23 = vst [vmem:[#allocation5] sm:$0xff] %v22
    // Predicated region
    $region10: #{tpu_custom_call.1} parent=1 // pred_check
      _
    $region11: #{tpu_custom_call.1} parent=1 // pred_check_branch
      %25 = sbr.rel (0) target = $region13
    $region12: #{tpu_custom_call.1} parent=1 // pred_region
      %s27 = ssub.s32 128, 128
      %28 = vsyncadd [#allocation4], %s27
      %s30 = sshll.u32 [#allocation5], 4
      %s31 = int_to_ptr.vmem [resolvable:$true] %s30
      %33 = dma.vmem_to_hbm [thread:$0]  %s31, 128, %s1, [#allocation4]
    $region13: #{tpu_custom_call.1} parent=1 // pred_fallthru
      _
    // Predicated region
    $region14: #{tpu_custom_call.1} parent=1 // pred_check
      _
    $region15: #{tpu_custom_call.1} parent=1 // pred_check_branch
      %35 = sbr.rel (0) target = $region17
    $region16: #{tpu_custom_call.1} parent=1 // pred_region
      %36 = dma.done [#allocation4], 128
    $region17: #{tpu_custom_call.1} parent=1 // pred_fallthru
      _
    %37 = vsyncpa [#allocation3], 1
    %38 = vsyncpa [#allocation4], 1

// kernel: tpu_custom_call.1
$region0: #{tpu_custom_call.1}
  #allocation0 [shape = 'u32[]', space=smem, size = 0x4, offset = 0x4, fixed_abs, tag = 'smem constant byte address 0x4 - core index']
  #allocation1 [shape = 'u32[144,128]{1,0:T(1,128)}', space=vmem, size = 0x12000, scoped, tag = 'internal scratch']
  %s0 = inlined_call_operand.hbm [shape: f32[128,128], index: 0, kind: input, shape index: {}]
  %s1 = inlined_call_operand.vmem [shape: f32[1,128], index: 1, kind: input, shape index: {}]
  %s2 = inlined_call_operand.vmem [shape: f32[1,128], index: 2, kind: input, shape index: {}]
  %s3 = inlined_call_operand.hbm [shape: bf16[128,256], index: 3, kind: input, shape index: {}]
  %s4 = inlined_call_operand.vmem [shape: f32[1,256], index: 4, kind: input, shape index: {}]
  %s5 = inlined_call_operand.hbm [shape: bf16[256,128], index: 5, kind: input, shape index: {}]
  %s6 = inlined_call_operand.vmem [shape: f32[1,128], index: 6, kind: input, shape index: {}]
  %s7 = inlined_call_operand.hbm [shape: f32[128,128], index: 7, kind: output, shape index: {}]
  %s8 = sld [smem:[#allocation0]]
  $region73: #{tpu_custom_call.1} parent=0
    _
  %s10 = ssub.s32 1, %s8
  %s11 = scalar_select 0, %s10, %s8
  $region1: #{tpu_custom_call.1} parent=0
    #allocation2 [shape = 'u8[32768]{0}', space=vmem, size = 0x8000, scoped, tag = 'input window, operand 0']
    #allocation3 [shape = 's32[2]{0}', space=sflag, size = 0x8, scoped, tag = 'scoped memory for tpu_custom_call.1']
    #allocation4 [shape = 's32[2]{0}', space=sflag, size = 0x8, scoped, tag = 'scoped memory for tpu_custom_call.1']
    #allocation5 [shape = 'u8[65536]{0}', space=vmem, size = 0x10000, scoped, tag = 'input window, operand 3, single buffered']
    #allocation6 [shape = 's32[1]{0}', space=sflag, size = 0x4, scoped, tag = 'scoped memory for tpu_custom_call.1']
    #allocation7 [shape = 'u8[65536]{0}', space=vmem, size = 0x10000, scoped, tag = 'input window, operand 5, single buffered']
    #allocation8 [shape = 'u8[32768]{0}', space=vmem, size = 0x8000, scoped, tag = 'output window, operand 0']
    %12 = vsyncpa [#allocation3], 0
    %s13 = scalar_lea.sflag [#allocation3], 1
    %14 = vsyncpa %s13, 0
    %15 = vsyncpa [#allocation6], 0
    %16 = vsyncpa [#allocation4], 0
    %s17 = scalar_lea.sflag [#allocation4], 1
    %18 = vsyncpa %s17, 0
    loop: start=0, step=1, limit=6
    $region2: #{tpu_custom_call.1} parent=1 // loop_pre_header
      _
    $region3: #{tpu_custom_call.1} parent=1 // loop_header
      %s20 = sphi 0, %s24
      %p21 = scmp.ge.s32.totalorder %s20, 6
      %s30 = sphi 0, %s32
      %s33 = sphi 0, %s30
      %s34 = sphi 0, %s33
      %s50 = sphi 0, %s34
      %s54 = sphi 0, %s54
      %s56 = sphi 0, %s54
      %s57 = sphi 0, %s56
      %s71 = sphi 0, %s57
      %s75 = sphi 0, %s75
      %s77 = sphi 0, %s75
      %s78 = sphi 0, %s77
      %s92 = sphi 0, %s78
      %s96 = sphi 0, %s96
      %s98 = sphi 0, %s96
      %s99 = sphi 0, %s98
      %s113 = sphi 0, %s99
      %s117 = sphi 0, %s117
      %s119 = sphi 0, %s117
      %s120 = sphi 0, %s119
      %s134 = sphi 0, %s120
      %s138 = sphi 0, %s138
      %s140 = sphi 0, %s138
      %s141 = sphi 0, %s140
      %s155 = sphi 0, %s141
      %s159 = sphi 0, %s159
      %s161 = sphi 0, %s159
      %s162 = sphi 0, %s161
      %s176 = sphi 0, %s162
      %s182 = sphi 0, %s184
      %s185 = sphi 0, %s182
      %s186 = sphi 0, %s185
      %s202 = sphi 0, %s186
    $region4: #{tpu_custom_call.1} parent=1 // loop_header_branch
      %23 = sbr.rel (%p21) target = $region8
    $region5: #{tpu_custom_call.1} parent=1 // loop_body
      %s25 = ssub.s32 %s20, 1
      %s26 = ssub.s32 %s20, 2
      %s27 = sadd.s32 %s20, 1
      %s28 = ssub.s32 %s20, %s27
      %p29 = scmp.eq.s32.totalorder %s28, 0
      %s31 = sadd.s32 %s30, 1
      %s32 = scalar_select %p29, %s30, %s31
      %p35 = pneg %p29
      %p36 = scmp.eq.s32.totalorder %s20, 3
      %p37 = por %p35, %p36
      %p38 = scmp.ne.s32.totalorder %s30, %s33
      %p39 = scmp.eq.s32.totalorder %s20, 0
      %p40 = por %p38, %p39
      %p41 = scmp.ne.s32.totalorder %s30, %s33
      %p42 = scmp.eq.s32.totalorder %s25, 3
      %p43 = por %p41, %p42
      %p44 = scmp.ne.s32.totalorder %s33, %s34
      %p45 = scmp.eq.s32.totalorder %s25, 0
      %p46 = por %p44, %p45
      %p47 = scmp.ne.s32.totalorder %s33, %s34
      %p48 = scmp.eq.s32.totalorder %s26, 3
      %p49 = por %p47, %p48
      %p51 = scmp.ne.s32.totalorder %s34, %s50
      %p52 = scmp.eq.s32.totalorder %s26, 0
      %p53 = por %p51, %p52
      %s55 = sadd.s32 %s54, 1
      %p58 = scmp.eq.s32.totalorder %s20, 3
      %p59 = scmp.ne.s32.totalorder %s54, %s56
      %p60 = scmp.eq.s32.totalorder %s20, 0
      %p61 = por %p59, %p60
      %p62 = scmp.ne.s32.totalorder %s54, %s56
      %p63 = scmp.eq.s32.totalorder %s25, 3
      %p64 = por %p62, %p63
      %p65 = scmp.ne.s32.totalorder %s56, %s57
      %p66 = scmp.eq.s32.totalorder %s25, 0
      %p67 = por %p65, %p66
      %p68 = scmp.ne.s32.totalorder %s56, %s57
      %p69 = scmp.eq.s32.totalorder %s26, 3
      %p70 = por %p68, %p69
      %p72 = scmp.ne.s32.totalorder %s57, %s71
      %p73 = scmp.eq.s32.totalorder %s26, 0
      %p74 = por %p72, %p73
      %s76 = sadd.s32 %s75, 1
      %p79 = scmp.eq.s32.totalorder %s20, 3
      %p80 = scmp.ne.s32.totalorder %s75, %s77
      %p81 = scmp.eq.s32.totalorder %s20, 0
      %p82 = por %p80, %p81
      %p83 = scmp.ne.s32.totalorder %s75, %s77
      %p84 = scmp.eq.s32.totalorder %s25, 3
      %p85 = por %p83, %p84
      %p86 = scmp.ne.s32.totalorder %s77, %s78
      %p87 = scmp.eq.s32.totalorder %s25, 0
      %p88 = por %p86, %p87
      %p89 = scmp.ne.s32.totalorder %s77, %s78
      %p90 = scmp.eq.s32.totalorder %s26, 3
      %p91 = por %p89, %p90
      %p93 = scmp.ne.s32.totalorder %s78, %s92
      %p94 = scmp.eq.s32.totalorder %s26, 0
      %p95 = por %p93, %p94
      %s97 = sadd.s32 %s96, 1
      %p100 = scmp.eq.s32.totalorder %s20, 3
      %p101 = scmp.ne.s32.totalorder %s96, %s98
      %p102 = scmp.eq.s32.totalorder %s20, 0
      %p103 = por %p101, %p102
      %p104 = scmp.ne.s32.totalorder %s96, %s98
      %p105 = scmp.eq.s32.totalorder %s25, 3
      %p106 = por %p104, %p105
      %p107 = scmp.ne.s32.totalorder %s98, %s99
      %p108 = scmp.eq.s32.totalorder %s25, 0
      %p109 = por %p107, %p108
      %p110 = scmp.ne.s32.totalorder %s98, %s99
      %p111 = scmp.eq.s32.totalorder %s26, 3
      %p112 = por %p110, %p111
      %p114 = scmp.ne.s32.totalorder %s99, %s113
      %p115 = scmp.eq.s32.totalorder %s26, 0
      %p116 = por %p114, %p115
      %s118 = sadd.s32 %s117, 1
      %p121 = scmp.eq.s32.totalorder %s20, 3
      %p122 = scmp.ne.s32.totalorder %s117, %s119
      %p123 = scmp.eq.s32.totalorder %s20, 0
      %p124 = por %p122, %p123
      %p125 = scmp.ne.s32.totalorder %s117, %s119
      %p126 = scmp.eq.s32.totalorder %s25, 3
      %p127 = por %p125, %p126
      %p128 = scmp.ne.s32.totalorder %s119, %s120
      %p129 = scmp.eq.s32.totalorder %s25, 0
      %p130 = por %p128, %p129
      %p131 = scmp.ne.s32.totalorder %s119, %s120
      %p132 = scmp.eq.s32.totalorder %s26, 3
      %p133 = por %p131, %p132
      %p135 = scmp.ne.s32.totalorder %s120, %s134
      %p136 = scmp.eq.s32.totalorder %s26, 0
      %p137 = por %p135, %p136
      %s139 = sadd.s32 %s138, 1
      %p142 = scmp.eq.s32.totalorder %s20, 3
      %p143 = scmp.ne.s32.totalorder %s138, %s140
      %p144 = scmp.eq.s32.totalorder %s20, 0
      %p145 = por %p143, %p144
      %p146 = scmp.ne.s32.totalorder %s138, %s140
      %p147 = scmp.eq.s32.totalorder %s25, 3
      %p148 = por %p146, %p147
      %p149 = scmp.ne.s32.totalorder %s140, %s141
      %p150 = scmp.eq.s32.totalorder %s25, 0
      %p151 = por %p149, %p150
      %p152 = scmp.ne.s32.totalorder %s140, %s141
      %p153 = scmp.eq.s32.totalorder %s26, 3
      %p154 = por %p152, %p153
      %p156 = scmp.ne.s32.totalorder %s141, %s155
      %p157 = scmp.eq.s32.totalorder %s26, 0
      %p158 = por %p156, %p157
      %s160 = sadd.s32 %s159, 1
      %p163 = scmp.eq.s32.totalorder %s20, 3
      %p164 = scmp.ne.s32.totalorder %s159, %s161
      %p165 = scmp.eq.s32.totalorder %s20, 0
      %p166 = por %p164, %p165
      %p167 = scmp.ne.s32.totalorder %s159, %s161
      %p168 = scmp.eq.s32.totalorder %s25, 3
      %p169 = por %p167, %p168
      %p170 = scmp.ne.s32.totalorder %s161, %s162
      %p171 = scmp.eq.s32.totalorder %s25, 0
      %p172 = por %p170, %p171
      %p173 = scmp.ne.s32.totalorder %s161, %s162
      %p174 = scmp.eq.s32.totalorder %s26, 3
      %p175 = por %p173, %p174
      %p177 = scmp.ne.s32.totalorder %s162, %s176
      %p178 = scmp.eq.s32.totalorder %s26, 0
      %p179 = por %p177, %p178
      %s180 = ssub.s32 %s20, %s27
      %p181 = scmp.eq.s32.totalorder %s180, 0
      %s183 = sadd.s32 %s182, 1
      %s184 = scalar_select %p181, %s182, %s183
      %p187 = pneg %p181
      %p188 = scmp.eq.s32.totalorder %s20, 3
      %p189 = por %p187, %p188
      %p190 = scmp.ne.s32.totalorder %s182, %s185
      %p191 = scmp.eq.s32.totalorder %s20, 0
      %p192 = por %p190, %p191
      %p193 = scmp.ne.s32.totalorder %s182, %s185
      %p194 = scmp.eq.s32.totalorder %s25, 3
      %p195 = por %p193, %p194
      %p196 = scmp.ne.s32.totalorder %s185, %s186
      %p197 = scmp.eq.s32.totalorder %s25, 0
      %p198 = por %p196, %p197
      %p199 = scmp.ne.s32.totalorder %s185, %s186
      %p200 = scmp.eq.s32.totalorder %s26, 3
      %p201 = por %p199, %p200
      %p203 = scmp.ne.s32.totalorder %s186, %s202
      %p204 = scmp.eq.s32.totalorder %s26, 0
      %p205 = por %p203, %p204
      %p206 = scmp.le.s32.totalorder 1, %s20
      %p207 = scmp.lt.s32.totalorder %s20, 5
      %p208 = pnand %p206, %p207
      %p209 = pneg %p208
      // Predicated region
      $region9: #{tpu_custom_call.1} parent=5 // pred_check
        _
      $region10: #{tpu_custom_call.1} parent=5 // pred_check_branch
        %211 = sbr.rel (%p208) target = $region12
      $region11: #{tpu_custom_call.1} parent=5 // pred_region
        %s212 = ssub.s32 %s20, 1
        // Predicated region
        $region13: #{tpu_custom_call.1} parent=11 // pred_check
          %p213 = pneg %p67
        $region14: #{tpu_custom_call.1} parent=11 // pred_check_branch
          %215 = sbr.rel (%p213) target = $region16
        $region15: #{tpu_custom_call.1} parent=11 // pred_region
          _
        $region16: #{tpu_custom_call.1} parent=11 // pred_fallthru
          _
        // Predicated region
        $region17: #{tpu_custom_call.1} parent=11 // pred_check
          %p216 = pneg %p88
        $region18: #{tpu_custom_call.1} parent=11 // pred_check_branch
          %218 = sbr.rel (%p216) target = $region20
        $region19: #{tpu_custom_call.1} parent=11 // pred_region
          _
        $region20: #{tpu_custom_call.1} parent=11 // pred_fallthru
          _
        // Predicated region
        $region21: #{tpu_custom_call.1} parent=11 // pred_check
          %p219 = pneg %p109
        $region22: #{tpu_custom_call.1} parent=11 // pred_check_branch
          %221 = sbr.rel (%p219) target = $region24
        $region23: #{tpu_custom_call.1} parent=11 // pred_region
          %s223 = ssub.s32 2048, 2048
          %224 = vsyncadd [#allocation6], %s223
          %s225 = sshll.u32 [#allocation5], 4
          %s226 = int_to_ptr.vmem [resolvable:$true] %s225
          %231 = dma.hbm_to_vmem [thread:$0]  %s3, 2048, %s226, [#allocation6], 128, 128, 8
        $region24: #{tpu_custom_call.1} parent=11 // pred_fallthru
          _
        // Predicated region
        $region25: #{tpu_custom_call.1} parent=11 // pred_check
          %p232 = pneg %p130
        $region26: #{tpu_custom_call.1} parent=11 // pred_check_branch
          %234 = sbr.rel (%p232) target = $region28
        $region27: #{tpu_custom_call.1} parent=11 // pred_region
          _
        $region28: #{tpu_custom_call.1} parent=11 // pred_fallthru
          _
        // Predicated region
        $region29: #{tpu_custom_call.1} parent=11 // pred_check
          %p235 = pneg %p151
        $region30: #{tpu_custom_call.1} parent=11 // pred_check_branch
          %237 = sbr.rel (%p235) target = $region32
        $region31: #{tpu_custom_call.1} parent=11 // pred_region
          %s239 = ssub.s32 2048, 2048
          %240 = vsyncadd [#allocation6], %s239
          %s241 = sshll.u32 [#allocation7], 4
          %s242 = int_to_ptr.vmem [resolvable:$true] %s241
          %247 = dma.hbm_to_vmem [thread:$0]  %s5, 2048, %s242, [#allocation6], 64, 64, 4
        $region32: #{tpu_custom_call.1} parent=11 // pred_fallthru
          _
        // Predicated region
        $region33: #{tpu_custom_call.1} parent=11 // pred_check
          %p248 = pneg %p172
        $region34: #{tpu_custom_call.1} parent=11 // pred_check_branch
          %250 = sbr.rel (%p248) target = $region36
        $region35: #{tpu_custom_call.1} parent=11 // pred_region
          _
        $region36: #{tpu_custom_call.1} parent=11 // pred_fallthru
          _
      $region12: #{tpu_custom_call.1} parent=5 // pred_fallthru
        _
      %p251 = scmp.lt.s32.totalorder %s20, 4
      // Predicated region
      $region37: #{tpu_custom_call.1} parent=5 // pred_check
        %p252 = pneg %p251
      $region38: #{tpu_custom_call.1} parent=5 // pred_check_branch
        %254 = sbr.rel (%p252) target = $region40
      $region39: #{tpu_custom_call.1} parent=5 // pred_region
        // Predicated region
        $region41: #{tpu_custom_call.1} parent=39 // pred_check
          %p255 = pneg %p40
        $region42: #{tpu_custom_call.1} parent=39 // pred_check_branch
          %257 = sbr.rel (%p255) target = $region44
        $region43: #{tpu_custom_call.1} parent=39 // pred_region
          %s258 = sand.u32 %s30, 1
          %s259 = scalar_lea.sflag [#allocation3], %s258
          %s260 = sand.u32 %s30, 1
          %s261 = smul.addr %s260, 32
          %s262 = scalar_lea.vmem [#allocation2], %s261
          %s263 = smul.u32 4, %s20
          %s265 = ssub.s32 512, 512
          %266 = vsyncadd %s259, %s265
          %s267 = smul.addr %s263, 128
          %s268 = scalar_lea.hbm %s0, %s267
          %s269 = sshll.u32 %s262, 4
          %s270 = int_to_ptr.vmem [resolvable:$true] %s269
          %275 = dma.hbm_to_vmem [thread:$0]  %s268, 512, %s270, %s259, 128, 128, 8
        $region44: #{tpu_custom_call.1} parent=39 // pred_fallthru
          _
      $region40: #{tpu_custom_call.1} parent=5 // pred_fallthru
        _
      %p276 = scmp.le.s32.totalorder 1, %s20
      %p277 = scmp.lt.s32.totalorder %s20, 5
      %p278 = pnand %p276, %p277
      %p279 = pneg %p278
      // Predicated region
      $region45: #{tpu_custom_call.1} parent=5 // pred_check
        _
      $region46: #{tpu_custom_call.1} parent=5 // pred_check_branch
        %281 = sbr.rel (%p278) target = $region48
      $region47: #{tpu_custom_call.1} parent=5 // pred_region
        %s282 = ssub.s32 %s20, 1
        %s283 = sand.u32 %s33, 1
        %s284 = scalar_lea.sflag [#allocation3], %s283
        %s285 = sand.u32 %s33, 1
        %s286 = smul.addr %s285, 32
        %s287 = scalar_lea.vmem [#allocation2], %s286
        // Predicated region
        $region49: #{tpu_custom_call.1} parent=47 // pred_check
          %p288 = pneg %p46
        $region50: #{tpu_custom_call.1} parent=47 // pred_check_branch
          %290 = sbr.rel (%p288) target = $region52
        $region51: #{tpu_custom_call.1} parent=47 // pred_region
          %291 = dma.done %s284, 512
        $region52: #{tpu_custom_call.1} parent=47 // pred_fallthru
          _
        // Predicated region
        $region53: #{tpu_custom_call.1} parent=47 // pred_check
          %p292 = pneg %p109
        $region54: #{tpu_custom_call.1} parent=47 // pred_check_branch
          %294 = sbr.rel (%p292) target = $region56
        $region55: #{tpu_custom_call.1} parent=47 // pred_region
          %295 = dma.done [#allocation6], 2048
        $region56: #{tpu_custom_call.1} parent=47 // pred_fallthru
          _
        // Predicated region
        $region57: #{tpu_custom_call.1} parent=47 // pred_check
          %p296 = pneg %p151
        $region58: #{tpu_custom_call.1} parent=47 // pred_check_branch
          %298 = sbr.rel (%p296) target = $region60
        $region59: #{tpu_custom_call.1} parent=47 // pred_region
          %299 = dma.done [#allocation6], 2048
        $region60: #{tpu_custom_call.1} parent=47 // pred_fallthru
          _
        %s300 = sand.u32 %s33, 1
        %s301 = scalar_lea.sflag [#allocation3], %s300
        %s302 = sand.u32 %s33, 1
        %s303 = smul.addr %s302, 32
        %s304 = scalar_lea.vmem [#allocation2], %s303
        %p305 = pneg %p46
        %p306 = pneg %p43
        %p307 = pneg %p67
        %p308 = pneg %p64
        %p309 = pneg %p88
        %p310 = pneg %p85
        %p311 = pneg %p109
        %p312 = pneg %p106
        %p313 = pneg %p130
        %p314 = pneg %p127
        %p315 = pneg %p151
        %p316 = pneg %p148
        %p317 = pneg %p172
        %p318 = pneg %p169
        %p319 = pneg %p198
        %p320 = pneg %p195
        %s321 = sand.u32 %s185, 1
        %s322 = scalar_lea.sflag [#allocation4], %s321
        %s323 = sand.u32 %s185, 1
        %s324 = smul.addr %s323, 32
        %s325 = scalar_lea.vmem [#allocation8], %s324
        %s326 = smul.u32 4, %s25
        %s327 = smul.u32 4, %s25
        %v329 = vld [vmem:[%s287] sm:$0xff]
        %v330 = vld [vmem:[%s287 + $0x8] sm:$0xff]
        %v331 = vld [vmem:[%s287 + $0x10] sm:$0xff]
        %v332 = vld [vmem:[%s287 + $0x18] sm:$0xff]
        %333 = vadd.xlane.f32.xlu0 %v329
        %v334 = vpop.xlane.xlu0 %333
        %335 = vadd.xlane.f32.xlu0 %v330
        %v336 = vpop.xlane.xlu0 %335
        %337 = vadd.xlane.f32.xlu0 %v331
        %v338 = vpop.xlane.xlu0 %337
        %339 = vadd.xlane.f32.xlu0 %v332
        %v340 = vpop.xlane.xlu0 %339
        %v341 = vmul.f32 %v334, 0.0078125
        %v342 = vmul.f32 %v336, 0.0078125
        %v343 = vmul.f32 %v338, 0.0078125
        %v344 = vmul.f32 %v340, 0.0078125
        %v345 = vsub.f32 %v329, %v341
        %v346 = vsub.f32 %v330, %v342
        %v347 = vsub.f32 %v331, %v343
        %v348 = vsub.f32 %v332, %v344
        %v349 = vmul.f32 %v345, %v345
        %v350 = vmul.f32 %v346, %v346
        %v351 = vmul.f32 %v347, %v347
        %v352 = vmul.f32 %v348, %v348
        %353 = vadd.xlane.f32.xlu0 %v349
        %v354 = vpop.xlane.xlu0 %353
        %355 = vadd.xlane.f32.xlu0 %v350
        %v356 = vpop.xlane.xlu0 %355
        %357 = vadd.xlane.f32.xlu0 %v351
        %v358 = vpop.xlane.xlu0 %357
        %359 = vadd.xlane.f32.xlu0 %v352
        %v360 = vpop.xlane.xlu0 %359
        %v361 = vmul.f32 %v354, 0.0078125
        %v362 = vmul.f32 %v356, 0.0078125
        %v363 = vmul.f32 %v358, 0.0078125
        %v364 = vmul.f32 %v360, 0.0078125
        %v365 = vadd.f32 %v361, 1e-05
        %v366 = vadd.f32 %v362, 1e-05
        %v367 = vadd.f32 %v363, 1e-05
        %v368 = vadd.f32 %v364, 1e-05
        %v369 = vrsqrt.pop %v365
        %v370 = vrsqrt.pop %v366
        %v371 = vrsqrt.pop %v367
        %v372 = vrsqrt.pop %v368
        %v373 = vmul.f32 %v345, %v369
        %v374 = vmul.f32 %v346, %v370
        %v375 = vmul.f32 %v347, %v371
        %v376 = vmul.f32 %v348, %v372
        %v377 = vld [vmem:[%s1] sm:$0x1]
        %v379 = vlaneseq
        %v380 = vshrl.u32 %v379, 7
        %v381 = vsub.s32 0, %v380
        %v382 = vrot.slane %v377, %v381
        %v384 = vmul.f32 %v373, %v382
        %v385 = vmul.f32 %v374, %v382
        %v386 = vmul.f32 %v375, %v382
        %v387 = vmul.f32 %v376, %v382
        %v388 = vld [vmem:[%s2] sm:$0x1]
        %v390 = vlaneseq
        %v391 = vshrl.u32 %v390, 7
        %v392 = vsub.s32 0, %v391
        %v393 = vrot.slane %v388, %v392
        %v395 = vadd.f32 %v384, %v393
        %v396 = vadd.f32 %v385, %v393
        %v397 = vadd.f32 %v386, %v393
        %v398 = vadd.f32 %v387, %v393
        %v399 = vpack.c.bf16 %v396, %v395
        %v400 = vpack.c.bf16 %v398, %v397
        %v401 = vld [vmem:[#allocation5] sm:$0xff]
        %v402 = vld [vmem:[#allocation5 + $0x8] sm:$0xff]
        %v403 = vld [vmem:[#allocation5 + $0x10] sm:$0xff]
        %v404 = vld [vmem:[#allocation5 + $0x18] sm:$0xff]
        %v405 = vld [vmem:[#allocation5 + $0x20] sm:$0xff]
        %v406 = vld [vmem:[#allocation5 + $0x28] sm:$0xff]
        %v407 = vld [vmem:[#allocation5 + $0x30] sm:$0xff]
        %v408 = vld [vmem:[#allocation5 + $0x38] sm:$0xff]
        %v409 = vld [vmem:[#allocation5 + $0x40] sm:$0xff]
        %v410 = vld [vmem:[#allocation5 + $0x48] sm:$0xff]
        %v411 = vld [vmem:[#allocation5 + $0x50] sm:$0xff]
        %v412 = vld [vmem:[#allocation5 + $0x58] sm:$0xff]
        %v413 = vld [vmem:[#allocation5 + $0x60] sm:$0xff]
        %v414 = vld [vmem:[#allocation5 + $0x68] sm:$0xff]
        %v415 = vld [vmem:[#allocation5 + $0x70] sm:$0xff]
        %v416 = vld [vmem:[#allocation5 + $0x78] sm:$0xff]
        %v417 = vld [vmem:[%s4] sm:$0x3]
        %v419 = vlaneseq
        %v420 = vshrl.u32 %v419, 7
        %v421 = vsub.s32 0, %v420
        %v422 = vrot.slane %v417, %v421
        %v423 = vlaneseq
        %v424 = vshrl.u32 %v423, 7
        %v425 = vsub.s32 1, %v424
        %v426 = vrot.slane %v417, %v425
        %v445 = vunpack.c.l.b16 %v401
        %v446 = vunpack.c.h.b16 %v401
        %v447 = vunpack.c.l.b16 %v402
        %v448 = vunpack.c.h.b16 %v402
        %v449 = vunpack.c.l.b16 %v403
        %v450 = vunpack.c.h.b16 %v403
        %v451 = vunpack.c.l.b16 %v404
        %v452 = vunpack.c.h.b16 %v404
        %v453 = vunpack.c.l.b16 %v405
        %v454 = vunpack.c.h.b16 %v405
        %v455 = vunpack.c.l.b16 %v406
        %v456 = vunpack.c.h.b16 %v406
        %v457 = vunpack.c.l.b16 %v407
        %v458 = vunpack.c.h.b16 %v407
        %v459 = vunpack.c.l.b16 %v408
        %v460 = vunpack.c.h.b16 %v408
        %v461 = vunpack.c.l.b16 %v409
        %v462 = vunpack.c.h.b16 %v409
        %v463 = vunpack.c.l.b16 %v410
        %v464 = vunpack.c.h.b16 %v410
        %v465 = vunpack.c.l.b16 %v411
        %v466 = vunpack.c.h.b16 %v411
        %v467 = vunpack.c.l.b16 %v412
        %v468 = vunpack.c.h.b16 %v412
        %v469 = vunpack.c.l.b16 %v413
        %v470 = vunpack.c.h.b16 %v413
        %v471 = vunpack.c.l.b16 %v414
        %v472 = vunpack.c.h.b16 %v414
        %v473 = vunpack.c.l.b16 %v415
        %v474 = vunpack.c.h.b16 %v415
        %v475 = vunpack.c.l.b16 %v416
        %v476 = vunpack.c.h.b16 %v416
        %v477 = vpack.c.b16 %v447, %v445
        %v478 = vpack.c.b16 %v448, %v446
        %v479 = vpack.c.b16 %v451, %v449
        %v480 = vpack.c.b16 %v452, %v450
        %v481 = vpack.c.b16 %v455, %v453
        %v482 = vpack.c.b16 %v456, %v454
        %v483 = vpack.c.b16 %v459, %v457
        %v484 = vpack.c.b16 %v460, %v458
        %v485 = vpack.c.b16 %v463, %v461
        %v486 = vpack.c.b16 %v464, %v462
        %v487 = vpack.c.b16 %v467, %v465
        %v488 = vpack.c.b16 %v468, %v466
        %v489 = vpack.c.b16 %v471, %v469
        %v490 = vpack.c.b16 %v472, %v470
        %v491 = vpack.c.b16 %v475, %v473
        %v492 = vpack.c.b16 %v476, %v474
        %509 = vmatprep.subr.bf16.mxu0 %v478
        %510 = vmatpush1.bf16.msra.mxu0 %v477
        %511 = vmatprep.subr.bf16.mxu0 %v480
        %512 = vmatpush1.bf16.msra.mxu0 %v479
        %513 = vmatprep.subr.bf16.mxu0 %v482
        %514 = vmatpush1.bf16.msra.mxu0 %v481
        %515 = vmatprep.subr.bf16.mxu0 %v484
        %516 = vmatpush1.bf16.msra.mxu0 %v483
        %517 = vmatprep.subr.bf16.mxu0 %v486
        %518 = vmatpush1.bf16.msra.mxu0 %v485
        %519 = vmatprep.subr.bf16.mxu0 %v488
        %520 = vmatpush1.bf16.msra.mxu0 %v487
        %521 = vmatprep.subr.bf16.mxu0 %v490
        %522 = vmatpush1.bf16.msra.mxu0 %v489
        %523 = vmatprep.subr.bf16.mxu0 %v492
        %524 = vmatpush1.bf16.msra.mxu0 %v491
        %525 = vmatprep.subr.bf16.mxu0 0
        %526 = vmatpush1.bf16.msra.mxu0 0
        %527 = vmatprep.subr.bf16.mxu0 0
        %528 = vmatpush1.bf16.msra.mxu0 0
        %529 = vmatprep.subr.bf16.mxu0 0
        %530 = vmatpush1.bf16.msra.mxu0 0
        %531 = vmatprep.subr.bf16.mxu0 0
        %532 = vmatpush1.bf16.msra.mxu0 0
        %533 = vmatprep.subr.bf16.mxu0 0
        %534 = vmatpush1.bf16.msra.mxu0 0
        %535 = vmatprep.subr.bf16.mxu0 0
        %536 = vmatpush1.bf16.msra.mxu0 0
        %537 = vmatprep.subr.bf16.mxu0 0
        %538 = vmatpush1.bf16.msra.mxu0 0
        %539 = vmatprep.subr.bf16.mxu0 0
        %540 = vmatpush1.bf16.msra.mxu0 0
        %541 = vmatprep.mubr.bf16.mxu0 0
        %542 = vmatmul.mubr.bf16.gmra.mrb[0].mxu0 %v399
        %v543 = vpop.f32.mrb[0].mxu0
        %v544 = vadd.f32 %v422, %v543
        %v545 = vpop.f32.mrb[0].mxu0
        %v546 = vadd.f32 %v426, %v545
        %v547 = vpop.f32.mrb[0].mxu0
        %v548 = vadd.f32 %v422, %v547
        %v549 = vpop.f32.mrb[0].mxu0
        %v550 = vadd.f32 %v426, %v549
        %551 = vmatprep.mubr.bf16.mxu0 0
        %552 = vmatmul.mubr.bf16.gmra.mrb[0].mxu0 %v400
        %v553 = vpop.f32.mrb[0].mxu0
        %v554 = vadd.f32 %v422, %v553
        %v555 = vpop.f32.mrb[0].mxu0
        %v556 = vadd.f32 %v426, %v555
        %v557 = vpop.f32.mrb[0].mxu0
        %v558 = vadd.f32 %v422, %v557
        %v559 = vpop.f32.mrb[0].mxu0
        %v560 = vadd.f32 %v426, %v559
        %561 = vdwg.mxu0
        %v562 = vmul.f32 %v544, 0.5
        %v563 = vmul.f32 %v546, 0.5
        %v564 = vmul.f32 %v548, 0.5
        %v565 = vmul.f32 %v550, 0.5
        %v566 = vmul.f32 %v554, 0.5
        %v567 = vmul.f32 %v556, 0.5
        %v568 = vmul.f32 %v558, 0.5
        %v569 = vmul.f32 %v560, 0.5
        %v570 = vmul.f32 %v544, 0.70710677
        %v571 = vmul.f32 %v546, 0.70710677
        %v572 = vmul.f32 %v548, 0.70710677
        %v573 = vmul.f32 %v550, 0.70710677
        %v574 = vmul.f32 %v554, 0.70710677
        %v575 = vmul.f32 %v556, 0.70710677
        %v576 = vmul.f32 %v558, 0.70710677
        %v577 = vmul.f32 %v560, 0.70710677
        %v578 = verf.f32.pop %v570
        %v579 = verf.f32.pop %v571
        %v580 = verf.f32.pop %v572
        %v581 = verf.f32.pop %v573
        %v582 = verf.f32.pop %v574
        %v583 = verf.f32.pop %v575
        %v584 = verf.f32.pop %v576
        %v585 = verf.f32.pop %v577
        %v586 = vadd.f32 %v578, 1.0
        %v587 = vadd.f32 %v579, 1.0
        %v588 = vadd.f32 %v580, 1.0
        %v589 = vadd.f32 %v581, 1.0
        %v590 = vadd.f32 %v582, 1.0
        %v591 = vadd.f32 %v583, 1.0
        %v592 = vadd.f32 %v584, 1.0
        %v593 = vadd.f32 %v585, 1.0
        %v594 = vmul.f32 %v562, %v586
        %v595 = vmul.f32 %v563, %v587
        %v596 = vmul.f32 %v564, %v588
        %v597 = vmul.f32 %v565, %v589
        %v598 = vmul.f32 %v566, %v590
        %v599 = vmul.f32 %v567, %v591
        %v600 = vmul.f32 %v568, %v592
        %v601 = vmul.f32 %v569, %v593
        %v602 = vpack.c.bf16 %v596, %v594
        %v603 = vpack.c.bf16 %v597, %v595
        %v604 = vpack.c.bf16 %v600, %v598
        %v605 = vpack.c.bf16 %v601, %v599
        %v606 = vld [vmem:[#allocation7] sm:$0xf]
        %v607 = vld [vmem:[#allocation7 + $0x4] sm:$0xf]
        %v608 = vld [vmem:[#allocation7 + $0x8] sm:$0xf]
        %v609 = vld [vmem:[#allocation7 + $0xc] sm:$0xf]
        %v610 = vld [vmem:[#allocation7 + $0x10] sm:$0xf]
        %v611 = vld [vmem:[#allocation7 + $0x14] sm:$0xf]
        %v612 = vld [vmem:[#allocation7 + $0x18] sm:$0xf]
        %v613 = vld [vmem:[#allocation7 + $0x1c] sm:$0xf]
        %v614 = vld [vmem:[#allocation7 + $0x20] sm:$0xf]
        %v615 = vld [vmem:[#allocation7 + $0x24] sm:$0xf]
        %v616 = vld [vmem:[#allocation7 + $0x28] sm:$0xf]
        %v617 = vld [vmem:[#allocation7 + $0x2c] sm:$0xf]
        %v618 = vld [vmem:[#allocation7 + $0x30] sm:$0xf]
        %v619 = vld [vmem:[#allocation7 + $0x34] sm:$0xf]
        %v620 = vld [vmem:[#allocation7 + $0x38] sm:$0xf]
        %v621 = vld [vmem:[#allocation7 + $0x3c] sm:$0xf]
        %v622 = vld [vmem:[#allocation7 + $0x40] sm:$0xf]
        %v623 = vld [vmem:[#allocation7 + $0x44] sm:$0xf]
        %v624 = vld [vmem:[#allocation7 + $0x48] sm:$0xf]
        %v625 = vld [vmem:[#allocation7 + $0x4c] sm:$0xf]
        %v626 = vld [vmem:[#allocation7 + $0x50] sm:$0xf]
        %v627 = vld [vmem:[#allocation7 + $0x54] sm:$0xf]
        %v628 = vld [vmem:[#allocation7 + $0x58] sm:$0xf]
        %v629 = vld [vmem:[#allocation7 + $0x5c] sm:$0xf]
        %v630 = vld [vmem:[#allocation7 + $0x60] sm:$0xf]
        %v631 = vld [vmem:[#allocation7 + $0x64] sm:$0xf]
        %v632 = vld [vmem:[#allocation7 + $0x68] sm:$0xf]
        %v633 = vld [vmem:[#allocation7 + $0x6c] sm:$0xf]
        %v634 = vld [vmem:[#allocation7 + $0x70] sm:$0xf]
        %v635 = vld [vmem:[#allocation7 + $0x74] sm:$0xf]
        %v636 = vld [vmem:[#allocation7 + $0x78] sm:$0xf]
        %v637 = vld [vmem:[#allocation7 + $0x7c] sm:$0xf]
        %v638 = vld [vmem:[%s6] sm:$0x1]
        %v640 = vlaneseq
        %v641 = vshrl.u32 %v640, 7
        %v642 = vsub.s32 0, %v641
        %v643 = vrot.slane %v638, %v642
        %v677 = vunpack.c.l.b16 %v606
        %v678 = vunpack.c.l.b16 %v607
        %v679 = vunpack.c.l.b16 %v608
        %v680 = vunpack.c.l.b16 %v609
        %v681 = vunpack.c.l.b16 %v610
        %v682 = vunpack.c.l.b16 %v611
        %v683 = vunpack.c.l.b16 %v612
        %v684 = vunpack.c.l.b16 %v613
        %v685 = vunpack.c.l.b16 %v614
        %v686 = vunpack.c.l.b16 %v615
        %v687 = vunpack.c.l.b16 %v616
        %v688 = vunpack.c.l.b16 %v617
        %v689 = vunpack.c.l.b16 %v618
        %v690 = vunpack.c.l.b16 %v619
        %v691 = vunpack.c.l.b16 %v620
        %v692 = vunpack.c.l.b16 %v621
        %v693 = vunpack.c.l.b16 %v622
        %v694 = vunpack.c.l.b16 %v623
        %v695 = vunpack.c.l.b16 %v624
        %v696 = vunpack.c.l.b16 %v625
        %v697 = vunpack.c.l.b16 %v626
        %v698 = vunpack.c.l.b16 %v627
        %v699 = vunpack.c.l.b16 %v628
        %v700 = vunpack.c.l.b16 %v629
        %v701 = vunpack.c.l.b16 %v630
        %v702 = vunpack.c.l.b16 %v631
        %v703 = vunpack.c.l.b16 %v632
        %v704 = vunpack.c.l.b16 %v633
        %v705 = vunpack.c.l.b16 %v634
        %v706 = vunpack.c.l.b16 %v635
        %v707 = vunpack.c.l.b16 %v636
        %v708 = vunpack.c.l.b16 %v637
        %v709 = vpack.c.b16 %v678, %v677
        %v710 = vpack.c.b16 %v680, %v679
        %v711 = vpack.c.b16 %v682, %v681
        %v712 = vpack.c.b16 %v684, %v683
        %v713 = vpack.c.b16 %v686, %v685
        %v714 = vpack.c.b16 %v688, %v687
        %v715 = vpack.c.b16 %v690, %v689
        %v716 = vpack.c.b16 %v692, %v691
        %v717 = vpack.c.b16 %v694, %v693
        %v718 = vpack.c.b16 %v696, %v695
        %v719 = vpack.c.b16 %v698, %v697
        %v720 = vpack.c.b16 %v700, %v699
        %v721 = vpack.c.b16 %v702, %v701
        %v722 = vpack.c.b16 %v704, %v703
        %v723 = vpack.c.b16 %v706, %v705
        %v724 = vpack.c.b16 %v708, %v707
        %741 = vmatprep.subr.bf16.mxu0 0
        %742 = vmatpush1.bf16.msra.mxu0 %v709
        %743 = vmatprep.subr.bf16.mxu0 0
        %744 = vmatpush1.bf16.msra.mxu0 %v710
        %745 = vmatprep.subr.bf16.mxu0 0
        %746 = vmatpush1.bf16.msra.mxu0 %v711
        %747 = vmatprep.subr.bf16.mxu0 0
        %748 = vmatpush1.bf16.msra.mxu0 %v712
        %749 = vmatprep.subr.bf16.mxu0 0
        %750 = vmatpush1.bf16.msra.mxu0 %v713
        %751 = vmatprep.subr.bf16.mxu0 0
        %752 = vmatpush1.bf16.msra.mxu0 %v714
        %753 = vmatprep.subr.bf16.mxu0 0
        %754 = vmatpush1.bf16.msra.mxu0 %v715
        %755 = vmatprep.subr.bf16.mxu0 0
        %756 = vmatpush1.bf16.msra.mxu0 %v716
        %757 = vmatprep.subr.bf16.mxu0 0
        %758 = vmatpush1.bf16.msra.mxu0 %v717
        %759 = vmatprep.subr.bf16.mxu0 0
        %760 = vmatpush1.bf16.msra.mxu0 %v718
        %761 = vmatprep.subr.bf16.mxu0 0
        %762 = vmatpush1.bf16.msra.mxu0 %v719
        %763 = vmatprep.subr.bf16.mxu0 0
        %764 = vmatpush1.bf16.msra.mxu0 %v720
        %765 = vmatprep.subr.bf16.mxu0 0
        %766 = vmatpush1.bf16.msra.mxu0 %v721
        %767 = vmatprep.subr.bf16.mxu0 0
        %768 = vmatpush1.bf16.msra.mxu0 %v722
        %769 = vmatprep.subr.bf16.mxu0 0
        %770 = vmatpush1.bf16.msra.mxu0 %v723
        %771 = vmatprep.subr.bf16.mxu0 0
        %772 = vmatpush1.bf16.msra.mxu0 %v724
        %773 = vmatprep.mubr.bf16.mxu0 %v603
        %774 = vmatmul.mubr.bf16.gmra.mrb[0].mxu0 %v602
        %v775 = vpop.f32.mrb[0].mxu0
        %v776 = vadd.f32 %v643, %v775
        %v777 = vpop.f32.mrb[0].mxu0
        %v778 = vpop.f32.mrb[0].mxu0
        %v779 = vadd.f32 %v643, %v778
        %v780 = vpop.f32.mrb[0].mxu0
        %781 = vmatprep.mubr.bf16.mxu0 %v605
        %782 = vmatmul.mubr.bf16.gmra.mrb[0].mxu0 %v604
        %v783 = vpop.f32.mrb[0].mxu0
        %v784 = vadd.f32 %v643, %v783
        %v785 = vpop.f32.mrb[0].mxu0
        %v786 = vpop.f32.mrb[0].mxu0
        %v787 = vadd.f32 %v643, %v786
        %v788 = vpop.f32.mrb[0].mxu0
        %789 = vdwg.mxu0
        %790 = vst [vmem:[%s325] sm:$0xff] %v776
        %791 = vst [vmem:[%s325 + $0x8] sm:$0xff] %v779
        %792 = vst [vmem:[%s325 + $0x10] sm:$0xff] %v784
        %793 = vst [vmem:[%s325 + $0x18] sm:$0xff] %v787
        %s794 = sand.u32 %s185, 1
        %s795 = scalar_lea.sflag [#allocation4], %s794
        %s796 = sand.u32 %s185, 1
        %s797 = smul.addr %s796, 32
        %s798 = scalar_lea.vmem [#allocation8], %s797
        // Predicated region
        $region61: #{tpu_custom_call.1} parent=47 // pred_check
          %p799 = pneg %p195
        $region62: #{tpu_custom_call.1} parent=47 // pred_check_branch
          %801 = sbr.rel (%p799) target = $region64
        $region63: #{tpu_custom_call.1} parent=47 // pred_region
          %s802 = smul.u32 4, %s25
          %s804 = ssub.s32 512, 512
          %805 = vsyncadd %s795, %s804
          %s806 = smul.addr %s802, 128
          %s807 = scalar_lea.hbm %s7, %s806
          %s808 = sshll.u32 %s798, 4
          %s809 = int_to_ptr.vmem [resolvable:$true] %s808
          %814 = dma.vmem_to_hbm [thread:$0]  %s809, 512, %s807, %s795, 128, 128, 8
        $region64: #{tpu_custom_call.1} parent=47 // pred_fallthru
          _
      $region48: #{tpu_custom_call.1} parent=5 // pred_fallthru
        _
      %p815 = scmp.le.s32.totalorder 2, %s20
      // Predicated region
      $region65: #{tpu_custom_call.1} parent=5 // pred_check
        %p816 = pneg %p815
      $region66: #{tpu_custom_call.1} parent=5 // pred_check_branch
        %818 = sbr.rel (%p816) target = $region68
      $region67: #{tpu_custom_call.1} parent=5 // pred_region
        %s819 = ssub.s32 %s20, 2
        // Predicated region
        $region69: #{tpu_custom_call.1} parent=67 // pred_check
          %p820 = pneg %p201
        $region70: #{tpu_custom_call.1} parent=67 // pred_check_branch
          %822 = sbr.rel (%p820) target = $region72
        $region71: #{tpu_custom_call.1} parent=67 // pred_region
          %s823 = sand.u32 %s186, 1
          %s824 = scalar_lea.sflag [#allocation4], %s823
          %s825 = sand.u32 %s186, 1
          %s826 = smul.addr %s825, 32
          %s827 = scalar_lea.vmem [#allocation8], %s826
          %828 = dma.done %s824, 512
        $region72: #{tpu_custom_call.1} parent=67 // pred_fallthru
          _
      $region68: #{tpu_custom_call.1} parent=5 // pred_fallthru
        _
    $region6: #{tpu_custom_call.1} parent=1 // loop_footer
      %s24 = sadd.s32 1, %s20
    $region7: #{tpu_custom_call.1} parent=1 // loop_footer_branch
      %19 = sbr.rel target = $region3
    $region8: #{tpu_custom_call.1} parent=1 // loop_exit
      _
    %829 = vsyncpa [#allocation3], 1
    %s830 = scalar_lea.sflag [#allocation3], 1
    %831 = vsyncpa %s830, 1
    %832 = vsyncpa [#allocation6], 1
    %833 = vsyncpa [#allocation4], 1
    %s834 = scalar_lea.sflag [#allocation4], 1
    %835 = vsyncpa %s834, 1

</llo_original>
